<compile_context>
chip_gen: v6e
topology: v6e:2x2x1
jax: 0.10.0
libtpu: 0.0.40
codegen_flags: <defaults>
</compile_context>

<pallas_src>
import functools

import jax
import jax.numpy as jnp
import numpy as np
from jax.experimental import pallas as pl
from jax.experimental.pallas import tpu as pltpu


def attention_head_kernel(x_ref, wqkv_ref, bqkv_ref, out_ref, *,
                          head_size, use_bf16, flatten_proj, lane_dense_out):
    bt, n, d = x_ref.shape
    h = head_size
    mm_dtype = jnp.bfloat16 if use_bf16 else jnp.float32

    w = wqkv_ref[...]          # (d, 3h), already cast to mm_dtype in wrapper
    b = bqkv_ref[...]          # (1, 3h), f32 (added after f32 accumulation)

    # --- Fused Q/K/V projection (one MXU matmul). Scale is pre-folded into Wq/bq.
    if flatten_proj:
        # N % 8 == 0 -> flatten is a free sublane view; M = bt*N rows on the MXU.
        xm = x_ref[...].reshape(bt * n, d).astype(mm_dtype)
        qkv = jnp.dot(xm, w, preferred_element_type=jnp.float32) + b
        qkv = qkv.reshape(bt, n, 3 * h)
    else:
        # Keep batched to avoid a materialized relayout when N % 8 != 0.
        xb = x_ref[...].astype(mm_dtype)
        qkv = jnp.einsum("bnd,dh->bnh", xb, w,
                         preferred_element_type=jnp.float32) + b

    q = qkv[..., 0:h]          # already scaled by 1/sqrt(h) via Wq/bq folding
    k = qkv[..., h:2 * h]
    v = qkv[..., 2 * h:3 * h]

    # --- Scaled dot-product attention (scale already applied to q).
    # TODO: for large N, tile keys with an online (flash-style) softmax instead
    # of materializing the full (bt, N, N) score matrix (VMEM bound on v7x).
    s = jnp.einsum("bnh,bmh->bnm", q.astype(mm_dtype), k.astype(mm_dtype),
                   preferred_element_type=jnp.float32)
    s = s - jnp.max(s, axis=-1, keepdims=True)            # f32 softmax math
    e = jnp.exp(s)
    denom = jnp.sum(e, axis=-1, keepdims=True)
    p = e * pl.reciprocal(denom, approx=True)              # EUP slot, VALU-free

    o = jnp.einsum("bnm,bmh->bnh", p.astype(mm_dtype), v.astype(mm_dtype),
                   preferred_element_type=jnp.float32)

    if lane_dense_out:
        out_ref[...] = o.reshape(bt, n * h).astype(out_ref.dtype)
    else:
        out_ref[...] = o.astype(out_ref.dtype)


def _step_bytes(bt, N, D, h, use_bf16):
    """Rough per-grid-step VMEM working-set estimate (bytes)."""
    mm_b = 2 if use_bf16 else 4
    x_tile = bt * N * D * 4 * 2                 # double-buffered input tile
    out_tile = bt * N * h * 4 * 2               # double-buffered output tile
    weights = (D * 3 * h * mm_b + 3 * h * 4) * 2
    interm = (bt * N * D * mm_b                 # xm cast
              + bt * N * 3 * h * 4              # qkv f32
              + 2 * bt * N * N * 4              # scores + exp f32
              + bt * N * N * mm_b               # p cast
              + bt * N * h * 4)                 # o f32
    return x_tile + out_tile + weights + interm


def _choose_block_b(B, N, D, h, use_bf16, budget_bytes=24 << 20):
    """Largest batch tile that divides B and fits the per-step VMEM budget.

    Single grid step whenever possible (no pointless splitting on 1-TC
    v5e/v6e); the <= ~24 MiB budget keeps per-core working sets safe on
    v7x's 64 MiB VMEM when the grid does split across its two TensorCores.
    """
    for bt in sorted((d for d in range(1, B + 1) if B % d == 0), reverse=True):
        if _step_bytes(bt, N, D, h, use_bf16) <= budget_bytes:
            return bt
    return 1


def _vmem_limit_bytes():
    try:
        phys = pltpu.get_tpu_info().vmem_capacity_bytes
    except Exception:
        phys = 64 << 20           # conservative: v7x per-core VMEM
    return int(min(100 << 20, (phys * 3) // 4))


def attention_head(x, params, *, head_size, use_bf16=True):
    B, N, D = x.shape
    h = head_size
    scale = 1.0 / (h ** 0.5)
    mm_dtype = jnp.bfloat16 if use_bf16 else jnp.float32

    # Static, one-time param prep (outside the kernel):
    #  * fold the softmax scale into Wq / bq,
    #  * fuse the three projections into one (D, 3h) weight / (1, 3h) bias,
    #  * cast the fused weight to the matmul dtype once.
    wqkv = jnp.concatenate(
        [params["wq"] * scale, params["wk"], params["wv"]], axis=-1
    ).astype(mm_dtype)
    bqkv = jnp.concatenate(
        [params["bq"] * scale, params["bk"], params["bv"]], axis=-1
    ).astype(jnp.float32)

    flatten_proj = (N % 8 == 0)
    lane_dense_out = flatten_proj and ((N * h) % 128 == 0)

    bt = _choose_block_b(B, N, D, h, use_bf16)
    grid = (B // bt,)

    kernel = functools.partial(
        attention_head_kernel, head_size=h, use_bf16=use_bf16,
        flatten_proj=flatten_proj, lane_dense_out=lane_dense_out)

    if lane_dense_out:
        out_shape = jax.ShapeDtypeStruct((B, N * h), jnp.float32)
        out_spec = pl.BlockSpec((bt, N * h), lambda i: (i, 0))
    else:
        out_shape = jax.ShapeDtypeStruct((B, N, h), jnp.float32)
        out_spec = pl.BlockSpec((bt, N, h), lambda i: (i, 0, 0))

    out = pl.pallas_call(
        kernel,
        out_shape=out_shape,
        grid=grid,
        in_specs=[
            pl.BlockSpec((bt, N, D), lambda i: (i, 0, 0)),      # x batch tile
            pl.BlockSpec(wqkv.shape, lambda i: (0, 0)),          # fused weight
            pl.BlockSpec(bqkv.shape, lambda i: (0, 0)),          # fused bias
        ],
        out_specs=out_spec,
        compiler_params=pltpu.CompilerParams(
            dimension_semantics=("parallel",),
            vmem_limit_bytes=_vmem_limit_bytes(),
        ),
    )(x, wqkv, bqkv)

    if lane_dense_out:
        out = out.reshape(B, N, h)
    return out


def reference_forward(x, params, *, head_size):
    """Plain-JAX (f32) reference reproducing the PyTorch forward."""
    q = x @ params["wq"] + params["bq"][0]
    k = x @ params["wk"] + params["bk"][0]
    v = x @ params["wv"] + params["bv"][0]
    s = jnp.einsum("bnh,bmh->bnm", q, k) / (head_size ** 0.5)
    p = jax.nn.softmax(s, axis=-1)
    return jnp.einsum("bnm,bmh->bnh", p, v)


if __name__ == "__main__":
    B, N, d_model, head_size = 2, 8, 32, 8

    key = jax.random.PRNGKey(0)
    kx, kq, kbq, kk, kbk, kv, kbv = jax.random.split(key, 7)
    x = jax.random.normal(kx, (B, N, d_model), jnp.float32)
    s = 0.1
    params = {
        # nn.Linear weights stored pre-transposed as (d_model, head_size)
        "wq": s * jax.random.normal(kq, (d_model, head_size), jnp.float32),
        "bq": s * jax.random.normal(kbq, (1, head_size), jnp.float32),
        "wk": s * jax.random.normal(kk, (d_model, head_size), jnp.float32),
        "bk": s * jax.random.normal(kbk, (1, head_size), jnp.float32),
        "wv": s * jax.random.normal(kv, (d_model, head_size), jnp.float32),
        "bv": s * jax.random.normal(kbv, (1, head_size), jnp.float32),
    }

    ref = jax.block_until_ready(reference_forward(x, params, head_size=head_size))

    # Shipping path: bf16 matmul operands + approx reciprocal => small
    # deviation from the f32/PyTorch-exact reference.
    out = jax.block_until_ready(
        attention_head(x, params, head_size=head_size, use_bf16=True))
    np.testing.assert_allclose(np.asarray(out), np.asarray(ref),
                               rtol=1e-2, atol=1e-2)

    # Validation escape hatch: f32 matmuls (only approx-reciprocal deviation).
    out_f32 = jax.block_until_ready(
        attention_head(x, params, head_size=head_size, use_bf16=False))
    np.testing.assert_allclose(np.asarray(out_f32), np.asarray(ref),
                               rtol=1e-2, atol=1e-2)

    print("KERNEL_OK")
</pallas_src>

<mosaic_0001>
module attributes {stable_mosaic.version = 11 : i64} {
  func.func @attention_head_kernel(%arg0: i32, %arg1: memref<2x8x32xf32, #tpu.memory_space<vmem>>, %arg2: memref<32x24xbf16, #tpu.memory_space<vmem>>, %arg3: memref<1x24xf32, #tpu.memory_space<vmem>>, %arg4: memref<2x8x8xf32, #tpu.memory_space<vmem>>) attributes {dimension_semantics = [#tpu.dimension_semantics<parallel>], iteration_bounds = array<i64: 1>, scalar_prefetch = 0 : i64, scratch_operands = 0 : i64, tpu.core_type = #tpu.core_type<tc>, window_params = [{transform_indices = @transform_0, window_bounds = array<i64: 2, 8, 32>}, {pipeline_mode = #tpu.pipeline_mode<synchronous>, transform_indices = @transform_1, window_bounds = array<i64: 32, 24>}, {pipeline_mode = #tpu.pipeline_mode<synchronous>, transform_indices = @transform_2, window_bounds = array<i64: 1, 24>}, {transform_indices = @transform_3, window_bounds = array<i64: 2, 8, 8>}]} {
    %c0 = arith.constant 0 : index
    %c0_0 = arith.constant 0 : index
    %0 = vector.load %arg2[%c0, %c0_0] : memref<32x24xbf16, #tpu.memory_space<vmem>>, vector<32x24xbf16>
    %c0_1 = arith.constant 0 : index
    %c0_2 = arith.constant 0 : index
    %1 = vector.load %arg3[%c0_1, %c0_2] : memref<1x24xf32, #tpu.memory_space<vmem>>, vector<1x24xf32>
    %c0_3 = arith.constant 0 : index
    %c0_4 = arith.constant 0 : index
    %c0_5 = arith.constant 0 : index
    %2 = vector.load %arg1[%c0_3, %c0_4, %c0_5] : memref<2x8x32xf32, #tpu.memory_space<vmem>>, vector<2x8x32xf32>
    %3 = vector.shape_cast %2 : vector<2x8x32xf32> to vector<16x32xf32>
    %4 = arith.truncf %3 : vector<16x32xf32> to vector<16x32xbf16>
    %cst = arith.constant dense<0.000000e+00> : vector<16x24xf32>
    %5 = tpu.matmul %4, %0, %cst {dimension_numbers = #tpu.dot_dimension_numbers<[1], [0], [0], [1], [0, 0, 1, 1], [], []>} : vector<16x32xbf16>, vector<32x24xbf16>, vector<16x24xf32> -> vector<16x24xf32>
    %6 = vector.broadcast %1 : vector<1x24xf32> to vector<16x24xf32>
    %7 = arith.addf %5, %6 : vector<16x24xf32>
    %8 = vector.shape_cast %7 : vector<16x24xf32> to vector<2x8x24xf32>
    %9 = vector.extract_strided_slice %8 {offsets = [0, 0, 0], sizes = [2, 8, 8], strides = [1, 1, 1]} : vector<2x8x24xf32> to vector<2x8x8xf32>
    %10 = vector.extract_strided_slice %8 {offsets = [0, 0, 8], sizes = [2, 8, 8], strides = [1, 1, 1]} : vector<2x8x24xf32> to vector<2x8x8xf32>
    %11 = vector.extract_strided_slice %8 {offsets = [0, 0, 16], sizes = [2, 8, 8], strides = [1, 1, 1]} : vector<2x8x24xf32> to vector<2x8x8xf32>
    %12 = arith.truncf %9 : vector<2x8x8xf32> to vector<2x8x8xbf16>
    %13 = arith.truncf %10 : vector<2x8x8xf32> to vector<2x8x8xbf16>
    "tpu.trace_start"() <{level = 10 : i32, message = "bnh,bmh->bnm"}> : () -> ()
    %cst_6 = arith.constant dense<0.000000e+00> : vector<2x8x8xf32>
    %14 = tpu.matmul %12, %13, %cst_6 {dimension_numbers = #tpu.dot_dimension_numbers<[2], [2], [1], [1], [0, 0, 0, 1, 1, 1], [0], [0]>} : vector<2x8x8xbf16>, vector<2x8x8xbf16>, vector<2x8x8xf32> -> vector<2x8x8xf32>
    "tpu.trace_stop"() : () -> ()
    %cst_7 = arith.constant dense<0xFF800000> : vector<2x8xf32>
    %15 = vector.multi_reduction <maximumf>, %14, %cst_7 [2] : vector<2x8x8xf32> to vector<2x8xf32>
    %16 = vector.shape_cast %15 : vector<2x8xf32> to vector<2x8x1xf32>
    %17 = vector.broadcast %16 : vector<2x8x1xf32> to vector<2x8x8xf32>
    %18 = arith.subf %14, %17 : vector<2x8x8xf32>
    %19 = math.exp %18 : vector<2x8x8xf32>
    %cst_8 = arith.constant dense<0.000000e+00> : vector<2x8xf32>
    %20 = vector.multi_reduction <add>, %19, %cst_8 [2] : vector<2x8x8xf32> to vector<2x8xf32>
    %21 = vector.shape_cast %20 : vector<2x8xf32> to vector<2x8x1xf32>
    %22 = tpu.reciprocal %21 {approx = true} : vector<2x8x1xf32> -> vector<2x8x1xf32>
    %23 = vector.broadcast %22 : vector<2x8x1xf32> to vector<2x8x8xf32>
    %24 = arith.mulf %19, %23 : vector<2x8x8xf32>
    %25 = arith.truncf %24 : vector<2x8x8xf32> to vector<2x8x8xbf16>
    %26 = arith.truncf %11 : vector<2x8x8xf32> to vector<2x8x8xbf16>
    "tpu.trace_start"() <{level = 10 : i32, message = "bnm,bmh->bnh"}> : () -> ()
    %cst_9 = arith.constant dense<0.000000e+00> : vector<2x8x8xf32>
    %27 = tpu.matmul %25, %26, %cst_9 {dimension_numbers = #tpu.dot_dimension_numbers<[2], [1], [1], [2], [0, 0, 0, 1, 1, 2], [0], [0]>} : vector<2x8x8xbf16>, vector<2x8x8xbf16>, vector<2x8x8xf32> -> vector<2x8x8xf32>
    "tpu.trace_stop"() : () -> ()
    %c0_10 = arith.constant 0 : index
    %c0_11 = arith.constant 0 : index
    %c0_12 = arith.constant 0 : index
    %28 = vector.load %arg4[%c0_10, %c0_11, %c0_12] : memref<2x8x8xf32, #tpu.memory_space<vmem>>, vector<2x8x8xf32>
    tpu.vector_store %arg4[%c0_10, %c0_11, %c0_12], %27 {strides = array<i32>} : memref<2x8x8xf32, #tpu.memory_space<vmem>>, vector<2x8x8xf32>,
    return
  }
  func.func @transform_0(%arg0: i32) -> (i32, i32, i32) {
    %c0_i32 = arith.constant 0 : i32
    %c0_i32_0 = arith.constant 0 : i32
    %c0_i32_1 = arith.constant 0 : i32
    return %arg0, %c0_i32, %c0_i32_0 : i32, i32, i32
  }
  func.func @transform_1(%arg0: i32) -> (i32, i32) {
    %c0_i32 = arith.constant 0 : i32
    %c0_i32_0 = arith.constant 0 : i32
    %c0_i32_1 = arith.constant 0 : i32
    return %c0_i32, %c0_i32_0 : i32, i32
  }
  func.func @transform_2(%arg0: i32) -> (i32, i32) {
    %c0_i32 = arith.constant 0 : i32
    %c0_i32_0 = arith.constant 0 : i32
    %c0_i32_1 = arith.constant 0 : i32
    return %c0_i32, %c0_i32_0 : i32, i32
  }
  func.func @transform_3(%arg0: i32) -> (i32, i32, i32) {
    %c0_i32 = arith.constant 0 : i32
    %c0_i32_0 = arith.constant 0 : i32
    %c0_i32_1 = arith.constant 0 : i32
    return %arg0, %c0_i32, %c0_i32_0 : i32, i32, i32
  }
}

</mosaic_0001>

<llo_original>
// kernel: tpu_custom_call.1
$region0: #{tpu_custom_call.1}
  #allocation0 [shape = 'u32[]', space=smem, size = 0x4, offset = 0x4, fixed_abs, tag = 'smem constant byte address 0x4 - core index']
  #allocation1 [shape = 'u32[144,128]{1,0:T(1,128)}', space=vmem, size = 0x12000, scoped, tag = 'internal scratch']
  %s0 = inlined_call_operand.vmem [shape: f32[2,8,32], index: 0, kind: input, shape index: {}]
  %s1 = inlined_call_operand.vmem [shape: bf16[32,24], index: 1, kind: input, shape index: {}]
  %s2 = inlined_call_operand.vmem [shape: f32[1,24], index: 2, kind: input, shape index: {}]
  %s3 = inlined_call_operand.hbm [shape: f32[2,8,8], index: 3, kind: output, shape index: {}]
  %s4 = sld [smem:[#allocation0]]
  $region22: #{tpu_custom_call.1} parent=0
    _
  %s6 = ssub.s32 1, %s4
  %s7 = scalar_select 0, %s6, %s4
  $region1: #{tpu_custom_call.1} parent=0
    #allocation2 [shape = 'u8[8192]{0}', space=vmem, size = 0x2000, scoped, tag = 'output window, operand 0, single buffered']
    #allocation3 [shape = 's32[1]{0}', space=sflag, size = 0x4, scoped, tag = 'scoped memory for tpu_custom_call.1']
    %8 = vsyncpa [#allocation3], 0
    // Predicated region
    $region2: #{tpu_custom_call.1} parent=1 // pred_check
      _
    $region3: #{tpu_custom_call.1} parent=1 // pred_check_branch
      %10 = sbr.rel (0) target = $region5
    $region4: #{tpu_custom_call.1} parent=1 // pred_region
      _
    $region5: #{tpu_custom_call.1} parent=1 // pred_fallthru
      _
    // Predicated region
    $region6: #{tpu_custom_call.1} parent=1 // pred_check
      _
    $region7: #{tpu_custom_call.1} parent=1 // pred_check_branch
      %12 = sbr.rel (0) target = $region9
    $region8: #{tpu_custom_call.1} parent=1 // pred_region
      _
    $region9: #{tpu_custom_call.1} parent=1 // pred_fallthru
      _
    // Predicated region
    $region10: #{tpu_custom_call.1} parent=1 // pred_check
      _
    $region11: #{tpu_custom_call.1} parent=1 // pred_check_branch
      %14 = sbr.rel (0) target = $region13
    $region12: #{tpu_custom_call.1} parent=1 // pred_region
      _
    $region13: #{tpu_custom_call.1} parent=1 // pred_fallthru
      _
    %v16 = vld [vmem:[%s1] sm:$0xf]
    %v17 = vld [vmem:[%s1 + $0x4] sm:$0xf]
    %v18 = vld [vmem:[%s1 + $0x8] sm:$0xf]
    %v19 = vld [vmem:[%s1 + $0xc] sm:$0xf]
    %v20 = vld [vmem:[%s2] sm:$0x1]
    %v21 = vld [vmem:[%s0] sm:$0xff]
    %v22 = vld [vmem:[%s0 + $0x8] sm:$0xff]
    %v23 = vpack.c.bf16 %v22, %v21
    %v25 = vlaneseq
    %v26 = vshrl.u32 %v25, 7
    %v27 = vsub.s32 0, %v26
    %v28 = vrot.slane %v20, %v27
    %v34 = vunpack.c.l.b16 %v16
    %v35 = vunpack.c.l.b16 %v17
    %v36 = vunpack.c.l.b16 %v18
    %v37 = vunpack.c.l.b16 %v19
    %v38 = vpack.c.b16 %v35, %v34
    %v39 = vpack.c.b16 %v37, %v36
    %vm42 = vcmask 261120
    %v44 = vsel %vm42, %v23, 0
    %46 = vmatprep.subr.bf16.mxu0 0
    %47 = vmatpush1.bf16.msra.mxu0 0
    %48 = vmatprep.subr.bf16.mxu0 0
    %49 = vmatpush1.bf16.msra.mxu0 0
    %50 = vmatprep.subr.bf16.mxu0 0
    %51 = vmatpush1.bf16.msra.mxu0 0
    %52 = vmatprep.subr.bf16.mxu0 0
    %53 = vmatpush1.bf16.msra.mxu0 0
    %54 = vmatprep.subr.bf16.mxu0 0
    %55 = vmatpush1.bf16.msra.mxu0 0
    %56 = vmatprep.subr.bf16.mxu0 0
    %57 = vmatpush1.bf16.msra.mxu0 0
    %58 = vmatprep.subr.bf16.mxu0 0
    %59 = vmatpush1.bf16.msra.mxu0 %v39
    %60 = vmatprep.subr.bf16.mxu0 0
    %61 = vmatpush1.bf16.msra.mxu0 %v38
    %62 = vmatprep.subr.bf16.mxu0 0
    %63 = vmatpush2.bf16.msra.mxu0 0
    %64 = vmatprep.subr.bf16.mxu0 0
    %65 = vmatpush2.bf16.msra.mxu0 0
    %66 = vmatprep.subr.bf16.mxu0 0
    %67 = vmatpush2.bf16.msra.mxu0 0
    %68 = vmatprep.subr.bf16.mxu0 0
    %69 = vmatpush2.bf16.msra.mxu0 0
    %70 = vmatprep.subr.bf16.mxu0 0
    %71 = vmatpush2.bf16.msra.mxu0 0
    %72 = vmatprep.subr.bf16.mxu0 0
    %73 = vmatpush2.bf16.msra.mxu0 0
    %74 = vmatprep.subr.bf16.mxu0 0
    %75 = vmatpush2.bf16.msra.mxu0 0
    %76 = vmatprep.subr.bf16.mxu0 0
    %77 = vmatpush2.bf16.msra.mxu0 0
    %78 = vmatprep.mubr.bf16.mxu0 0
    %79 = vmatmul.mubr.bf16.gmra.mxu0 %v44
    %v80 = vpop.f32.mrf.mxu0
    %v81 = vadd.f32 %v28, %v80
    %v82 = vpop.f32.mrf.mxu0
    %v83 = vpop.f32.mrf.mxu0
    %v84 = vadd.f32 %v28, %v83
    %v85 = vpop.f32.mrf.mxu0
    %86 = vdwg.mxu0
    %v87 = vpack.c.bf16 %v81, %v81
    %v88 = vpack.c.bf16 %v84, %v84
    %90 = vrot.lane.b32.xlu0 %v87, 120
    %v91 = vpop.permute.xlu0 %90
    %vm92 = vcmask 64512
    %v94 = vsel %vm92, %v87, 0
    %v97 = vsel %vm92, %v91, 0
    %99 = vmatprep.subr.bf16.mxu0 0
    %100 = vmatpush1.bf16.xpose.msra.mxu0 0
    %101 = vmatprep.subr.bf16.mxu0 0
    %102 = vmatpush1.bf16.xpose.msra.mxu0 0
    %103 = vmatprep.subr.bf16.mxu0 0
    %104 = vmatpush1.bf16.xpose.msra.mxu0 0
    %105 = vmatprep.subr.bf16.mxu0 0
    %106 = vmatpush1.bf16.xpose.msra.mxu0 0
    %107 = vmatprep.subr.bf16.mxu0 0
    %108 = vmatpush1.bf16.xpose.msra.mxu0 0
    %109 = vmatprep.subr.bf16.mxu0 0
    %110 = vmatpush1.bf16.xpose.msra.mxu0 0
    %111 = vmatprep.subr.bf16.mxu0 0
    %112 = vmatpush1.bf16.xpose.msra.mxu0 0
    %113 = vmatprep.subr.bf16.mxu0 0
    %114 = vmatpush1.bf16.xpose.msra.mxu0 %v97
    %115 = vmatprep.subr.bf16.mxu0 0
    %116 = vmatpush2.bf16.xpose.msra.mxu0 0
    %117 = vmatprep.subr.bf16.mxu0 0
    %118 = vmatpush2.bf16.xpose.msra.mxu0 0
    %119 = vmatprep.subr.bf16.mxu0 0
    %120 = vmatpush2.bf16.xpose.msra.mxu0 0
    %121 = vmatprep.subr.bf16.mxu0 0
    %122 = vmatpush2.bf16.xpose.msra.mxu0 0
    %123 = vmatprep.subr.bf16.mxu0 0
    %124 = vmatpush2.bf16.xpose.msra.mxu0 0
    %125 = vmatprep.subr.bf16.mxu0 0
    %126 = vmatpush2.bf16.xpose.msra.mxu0 0
    %127 = vmatprep.subr.bf16.mxu0 0
    %128 = vmatpush2.bf16.xpose.msra.mxu0 0
    %129 = vmatprep.subr.bf16.mxu0 0
    %130 = vmatpush2.bf16.xpose.msra.mxu0 0
    %131 = vmatprep.mubr.bf16.mxu0 0
    %132 = vmatmul.mubr.bf16.gmra.mxu0 %v94
    %v133 = vpop.f32.mrf.mxu0
    %v134 = vadd.f32 0.0, %v133
    %v135 = vpop.f32.mrf.mxu0
    %v136 = vpop.f32.mrf.mxu0
    %v137 = vpop.f32.mrf.mxu0
    %138 = vdwg.mxu0
    %140 = vrot.lane.b32.xlu0 %v88, 120
    %v141 = vpop.permute.xlu0 %140
    %v143 = vsel %vm92, %v88, 0
    %v146 = vsel %vm92, %v141, 0
    %148 = vmatprep.subr.bf16.mxu0 0
    %149 = vmatpush1.bf16.xpose.msra.mxu0 0
    %150 = vmatprep.subr.bf16.mxu0 0
    %151 = vmatpush1.bf16.xpose.msra.mxu0 0
    %152 = vmatprep.subr.bf16.mxu0 0
    %153 = vmatpush1.bf16.xpose.msra.mxu0 0
    %154 = vmatprep.subr.bf16.mxu0 0
    %155 = vmatpush1.bf16.xpose.msra.mxu0 0
    %156 = vmatprep.subr.bf16.mxu0 0
    %157 = vmatpush1.bf16.xpose.msra.mxu0 0
    %158 = vmatprep.subr.bf16.mxu0 0
    %159 = vmatpush1.bf16.xpose.msra.mxu0 0
    %160 = vmatprep.subr.bf16.mxu0 0
    %161 = vmatpush1.bf16.xpose.msra.mxu0 0
    %162 = vmatprep.subr.bf16.mxu0 0
    %163 = vmatpush1.bf16.xpose.msra.mxu0 %v146
    %164 = vmatprep.subr.bf16.mxu0 0
    %165 = vmatpush2.bf16.xpose.msra.mxu0 0
    %166 = vmatprep.subr.bf16.mxu0 0
    %167 = vmatpush2.bf16.xpose.msra.mxu0 0
    %168 = vmatprep.subr.bf16.mxu0 0
    %169 = vmatpush2.bf16.xpose.msra.mxu0 0
    %170 = vmatprep.subr.bf16.mxu0 0
    %171 = vmatpush2.bf16.xpose.msra.mxu0 0
    %172 = vmatprep.subr.bf16.mxu0 0
    %173 = vmatpush2.bf16.xpose.msra.mxu0 0
    %174 = vmatprep.subr.bf16.mxu0 0
    %175 = vmatpush2.bf16.xpose.msra.mxu0 0
    %176 = vmatprep.subr.bf16.mxu0 0
    %177 = vmatpush2.bf16.xpose.msra.mxu0 0
    %178 = vmatprep.subr.bf16.mxu0 0
    %179 = vmatpush2.bf16.xpose.msra.mxu0 0
    %180 = vmatprep.mubr.bf16.mxu0 0
    %181 = vmatmul.mubr.bf16.gmra.mxu0 %v143
    %v182 = vpop.f32.mrf.mxu0
    %v183 = vadd.f32 0.0, %v182
    %v184 = vpop.f32.mrf.mxu0
    %v185 = vpop.f32.mrf.mxu0
    %v186 = vpop.f32.mrf.mxu0
    %187 = vdwg.mxu0
    %v188 = vsel %vm92, %v134, -inf
    %189 = vmax.xlane.f32.xlu0 %v188
    %v190 = vpop.xlane.xlu0 %189
    %v191 = vsel %vm92, %v183, -inf
    %192 = vmax.xlane.f32.xlu0 %v191
    %v193 = vpop.xlane.xlu0 %192
    %v194 = vsub.f32 %v134, %v190
    %v195 = vsub.f32 %v183, %v193
    %v196 = vmul.f32 %v194, 1.442695
    %v197 = vpow.pop %v196
    %v198 = vmul.f32 %v195, 1.442695
    %v199 = vpow.pop %v198
    %v200 = vsel %vm92, %v197, 0.0
    %201 = vadd.xlane.f32.xlu0 %v200
    %v202 = vpop.xlane.xlu0 %201
    %v203 = vsel %vm92, %v199, 0.0
    %204 = vadd.xlane.f32.xlu0 %v203
    %v205 = vpop.xlane.xlu0 %204
    %v206 = vrcp.pop %v202
    %v207 = vrcp.pop %v205
    %v208 = vmul.f32 %v197, %v206
    %v209 = vmul.f32 %v199, %v207
    %v210 = vpack.c.bf16 %v208, %v208
    %v211 = vpack.c.bf16 %v209, %v209
    %212 = vrot.lane.b32.xlu0 %v87, 112
    %v213 = vpop.permute.xlu0 %212
    %v215 = vsel %vm92, %v210, 0
    %vm217 = vcmask 1043456
    %v219 = vsel %vm217, %v213, 0
    %221 = vmatprep.subr.bf16.mxu0 0
    %222 = vmatpush1.bf16.msra.mxu0 0
    %223 = vmatprep.subr.bf16.mxu0 0
    %224 = vmatpush1.bf16.msra.mxu0 0
    %225 = vmatprep.subr.bf16.mxu0 0
    %226 = vmatpush1.bf16.msra.mxu0 0
    %227 = vmatprep.subr.bf16.mxu0 0
    %228 = vmatpush1.bf16.msra.mxu0 0
    %229 = vmatprep.subr.bf16.mxu0 0
    %230 = vmatpush1.bf16.msra.mxu0 0
    %231 = vmatprep.subr.bf16.mxu0 0
    %232 = vmatpush1.bf16.msra.mxu0 0
    %233 = vmatprep.subr.bf16.mxu0 0
    %234 = vmatpush1.bf16.msra.mxu0 0
    %235 = vmatprep.subr.bf16.mxu0 0
    %236 = vmatpush1.bf16.msra.mxu0 %v219
    %237 = vmatprep.subr.bf16.mxu0 0
    %238 = vmatpush2.bf16.msra.mxu0 0
    %239 = vmatprep.subr.bf16.mxu0 0
    %240 = vmatpush2.bf16.msra.mxu0 0
    %241 = vmatprep.subr.bf16.mxu0 0
    %242 = vmatpush2.bf16.msra.mxu0 0
    %243 = vmatprep.subr.bf16.mxu0 0
    %244 = vmatpush2.bf16.msra.mxu0 0
    %245 = vmatprep.subr.bf16.mxu0 0
    %246 = vmatpush2.bf16.msra.mxu0 0
    %247 = vmatprep.subr.bf16.mxu0 0
    %248 = vmatpush2.bf16.msra.mxu0 0
    %249 = vmatprep.subr.bf16.mxu0 0
    %250 = vmatpush2.bf16.msra.mxu0 0
    %251 = vmatprep.subr.bf16.mxu0 0
    %252 = vmatpush2.bf16.msra.mxu0 0
    %253 = vmatprep.mubr.bf16.mxu0 0
    %254 = vmatmul.mubr.bf16.gmra.mxu0 %v215
    %v255 = vpop.f32.mrf.mxu0
    %v256 = vadd.f32 0.0, %v255
    %v257 = vpop.f32.mrf.mxu0
    %v258 = vpop.f32.mrf.mxu0
    %v259 = vpop.f32.mrf.mxu0
    %260 = vdwg.mxu0
    %261 = vrot.lane.b32.xlu0 %v88, 112
    %v262 = vpop.permute.xlu0 %261
    %v264 = vsel %vm92, %v211, 0
    %v267 = vsel %vm217, %v262, 0
    %269 = vmatprep.subr.bf16.mxu0 0
    %270 = vmatpush1.bf16.msra.mxu0 0
    %271 = vmatprep.subr.bf16.mxu0 0
    %272 = vmatpush1.bf16.msra.mxu0 0
    %273 = vmatprep.subr.bf16.mxu0 0
    %274 = vmatpush1.bf16.msra.mxu0 0
    %275 = vmatprep.subr.bf16.mxu0 0
    %276 = vmatpush1.bf16.msra.mxu0 0
    %277 = vmatprep.subr.bf16.mxu0 0
    %278 = vmatpush1.bf16.msra.mxu0 0
    %279 = vmatprep.subr.bf16.mxu0 0
    %280 = vmatpush1.bf16.msra.mxu0 0
    %281 = vmatprep.subr.bf16.mxu0 0
    %282 = vmatpush1.bf16.msra.mxu0 0
    %283 = vmatprep.subr.bf16.mxu0 0
    %284 = vmatpush1.bf16.msra.mxu0 %v267
    %285 = vmatprep.subr.bf16.mxu0 0
    %286 = vmatpush2.bf16.msra.mxu0 0
    %287 = vmatprep.subr.bf16.mxu0 0
    %288 = vmatpush2.bf16.msra.mxu0 0
    %289 = vmatprep.subr.bf16.mxu0 0
    %290 = vmatpush2.bf16.msra.mxu0 0
    %291 = vmatprep.subr.bf16.mxu0 0
    %292 = vmatpush2.bf16.msra.mxu0 0
    %293 = vmatprep.subr.bf16.mxu0 0
    %294 = vmatpush2.bf16.msra.mxu0 0
    %295 = vmatprep.subr.bf16.mxu0 0
    %296 = vmatpush2.bf16.msra.mxu0 0
    %297 = vmatprep.subr.bf16.mxu0 0
    %298 = vmatpush2.bf16.msra.mxu0 0
    %299 = vmatprep.subr.bf16.mxu0 0
    %300 = vmatpush2.bf16.msra.mxu0 0
    %301 = vmatprep.mubr.bf16.mxu0 0
    %302 = vmatmul.mubr.bf16.gmra.mxu0 %v264
    %v303 = vpop.f32.mrf.mxu0
    %v304 = vadd.f32 0.0, %v303
    %v305 = vpop.f32.mrf.mxu0
    %v306 = vpop.f32.mrf.mxu0
    %v307 = vpop.f32.mrf.mxu0
    %308 = vdwg.mxu0
    %309 = vst.msk [vmem:[#allocation2] sm:$0xff] %vm92, %v256
    %310 = vst.msk [vmem:[#allocation2 + $0x8] sm:$0xff] %vm92, %v304
    // Predicated region
    $region14: #{tpu_custom_call.1} parent=1 // pred_check
      _
    $region15: #{tpu_custom_call.1} parent=1 // pred_check_branch
      %312 = sbr.rel (0) target = $region17
    $region16: #{tpu_custom_call.1} parent=1 // pred_region
      %s314 = ssub.s32 256, 256
      %315 = vsyncadd [#allocation3], %s314
      %s316 = sshll.u32 [#allocation2], 4
      %s317 = int_to_ptr.vmem [resolvable:$true] %s316
      %322 = dma.vmem_to_hbm [thread:$0]  %s317, 256, %s3, [#allocation3], 128, 128, 8
    $region17: #{tpu_custom_call.1} parent=1 // pred_fallthru
      _
    // Predicated region
    $region18: #{tpu_custom_call.1} parent=1 // pred_check
      _
    $region19: #{tpu_custom_call.1} parent=1 // pred_check_branch
      %324 = sbr.rel (0) target = $region21
    $region20: #{tpu_custom_call.1} parent=1 // pred_region
      %325 = dma.done [#allocation3], 256
    $region21: #{tpu_custom_call.1} parent=1 // pred_fallthru
      _
    %326 = vsyncpa [#allocation3], 1

</llo_original>
